<compile_context>
chip_gen: v7x
topology: tpu7x:2x2x1
jax: 0.10.0
libtpu: 0.0.40
codegen_flags: <defaults>
</compile_context>

<pallas_src>
import functools

import numpy as np
import jax
import jax.numpy as jnp
from jax.experimental import pallas as pl
from jax.experimental.pallas import tpu as pltpu  # noqa: F401  (TPU backend)


def _round_up(v, m):
    return (v + m - 1) // m * m


# ----------------------------------------------------------------------------
# Pallas kernel: fused packed linear + bias + paired log_softmax (two halves)
# ----------------------------------------------------------------------------
def classifier_kernel(x_ref, w_ref, b_ref, o_ref):
    # x_ref: (B,  CH)    f32  -- flattened (batch, center*hidden), unpadded
    # w_ref: (CH, 2*Np)  bf16 -- cols [0:Np] = logit0 weights, [Np:2Np] = logit1
    # b_ref: (1,  2*Np)  f32
    # o_ref: (B,  2*Np)  f32  -- cols [0:Np] = log p0, [Np:2Np] = log p1
    x = x_ref[...].astype(jnp.bfloat16)          # bf16 MXU path, f32 accumulate
    y = jnp.dot(x, w_ref[...], preferred_element_type=jnp.float32)
    y = y + b_ref[...]

    n = o_ref.shape[1] // 2                      # Np (multiple of 128 lanes)
    z0 = y[:, :n]
    z1 = y[:, n:]
    d = z0 - z1
    # 2-class log-softmax via the softplus identity (1 exp + 1 log on the EUP):
    #   log p0 = min(0, d)  - log(1 + exp(-|d|))
    #   log p1 = min(0, -d) - log(1 + exp(-|d|))
    lse = jnp.log(1.0 + jnp.exp(-jnp.abs(d)))
    o_ref[:, :n] = jnp.minimum(d, 0.0) - lse
    o_ref[:, n:] = jnp.minimum(-d, 0.0) - lse


# ----------------------------------------------------------------------------
# One-time parameter packing (weights are parameters, not activations)
# ----------------------------------------------------------------------------
def pack_classifier_params(weights, biases, counts, hidden, n_pad):
    """Pack per-center Linear params into the lane-dense two-half layout."""
    counts = list(counts)
    n_au = sum(counts)
    ch = hidden * len(counts)

    # Block-diagonal pack in PyTorch's interleaved (logit0, logit1) column order.
    w_big = jnp.zeros((ch, 2 * n_au), jnp.float32)
    b_big = jnp.zeros((2 * n_au,), jnp.float32)
    col = 0
    for i, c in enumerate(counts):
        w_big = w_big.at[i * hidden:(i + 1) * hidden, col:col + 2 * c].set(weights[i])
        b_big = b_big.at[col:col + 2 * c].set(biases[i])
        col += 2 * c

    # De-interleave into [all logit0 | all logit1] halves, pad each half to Np.
    w0, w1 = w_big[:, 0::2], w_big[:, 1::2]
    b0, b1 = b_big[0::2], b_big[1::2]

    w_pack = jnp.zeros((ch, 2 * n_pad), jnp.float32)
    w_pack = w_pack.at[:, :n_au].set(w0)
    w_pack = w_pack.at[:, n_pad:n_pad + n_au].set(w1)
    b_pack = jnp.zeros((1, 2 * n_pad), jnp.float32)
    b_pack = b_pack.at[0, :n_au].set(b0)
    b_pack = b_pack.at[0, n_pad:n_pad + n_au].set(b1)

    # Weights in bf16 (single-pass MXU path on all generations, half the DMA
    # bytes); bias stays f32 for the f32 epilogue.
    return w_pack.astype(jnp.bfloat16), b_pack


# ----------------------------------------------------------------------------
# Forward pass (hot path) -- takes the pre-packed parameters
# ----------------------------------------------------------------------------
@functools.partial(jax.jit, static_argnames=("counts", "n_pad"))
def classifier_forward(tensors, masks, w_pack, b_pack, *, counts, n_pad):
    """Pallas-backed equivalent of Classifier.forward.

    tensors: (B, n_center, H) f32
    masks:   (B, n_center)
    Returns (out_tensor (B, n_au, 2), au_masks (B, n_au)).
    """
    bs, n_center, hidden = tensors.shape
    counts = tuple(counts)
    n_au = sum(counts)
    ch = n_center * hidden

    # x stays unpadded / uncast: block_shape == full array dims is allowed, and
    # the bf16 cast happens inside the kernel (no extra XLA launches or HBM
    # round-trips for a padded copy of x).
    x = tensors.reshape(bs, ch)

    cost = pl.CostEstimate(
        flops=2 * bs * ch * 2 * n_pad,
        transcendentals=2 * bs * n_pad,
        bytes_accessed=(bs * ch * 4) + (ch * 2 * n_pad * 2)
        + (2 * n_pad * 4) + (bs * 2 * n_pad * 4),
    )

    out_p = pl.pallas_call(
        classifier_kernel,
        out_shape=jax.ShapeDtypeStruct((bs, 2 * n_pad), jnp.float32),
        in_specs=[
            pl.BlockSpec((bs, ch), lambda: (0, 0)),
            pl.BlockSpec((ch, 2 * n_pad), lambda: (0, 0)),
            pl.BlockSpec((1, 2 * n_pad), lambda: (0, 0)),
        ],
        out_specs=pl.BlockSpec((bs, 2 * n_pad), lambda: (0, 0)),
        cost_estimate=cost,
    )(x, w_pack, b_pack)

    # Glue: re-interleave the two lane-dense halves back to the module's
    # (B, n_au, 2) output contract (downstream consumers could instead take the
    # halves directly and skip this relayout).
    log0 = out_p[:, :n_au]
    log1 = out_p[:, n_pad:n_pad + n_au]
    out_tensor = jnp.stack([log0, log1], axis=2)

    # Glue: torch.repeat_interleave(masks, counts, dim=1) with static counts,
    # lowered as concatenated slices (no gather).
    au_masks = jnp.repeat(masks, repeats=np.asarray(counts), axis=1,
                          total_repeat_length=n_au)
    return out_tensor, au_masks


# ----------------------------------------------------------------------------
# Pure-JAX reference (mirrors the PyTorch forward exactly) for verification
# ----------------------------------------------------------------------------
def classifier_reference(tensors, masks, weights, biases, counts):
    bs = tensors.shape[0]
    pieces = []
    for i, (w, b) in enumerate(zip(weights, biases)):
        y = tensors[:, i, :] @ w + b            # (B, 2*counts[i])
        pieces.append(y.reshape(bs, -1, 2))
    out = jnp.concatenate(pieces, axis=1)       # (B, n_au, 2)
    out = jax.nn.log_softmax(out, axis=2)
    rep_idx = []
    for i, c in enumerate(counts):
        rep_idx.extend([i] * c)
    return out, masks[:, jnp.asarray(rep_idx)]


if __name__ == "__main__":
    # Synthetic, deterministic configuration (config.get_inds is not available):
    # n_center = 4 centers with the per-center AU counts below, hidden_dim = 32.
    # TODO(synk): counts come from config.get_inds() in the original model.
    counts = (3, 2, 4, 1)            # sum = 10 AUs
    n_center = len(counts)
    hidden_dim = 32
    batch = 2

    n_au = sum(counts)
    ch = n_center * hidden_dim
    n_pad = _round_up(max(n_au, 128), 128)       # 128 lane-dense per-half output

    key = jax.random.PRNGKey(0)
    k_x, k_m, *k_params = jax.random.split(key, 2 + 2 * n_center)

    tensors = jax.random.normal(k_x, (batch, n_center, hidden_dim), jnp.float32)
    masks = (jax.random.uniform(k_m, (batch, n_center)) > 0.3).astype(jnp.float32)

    # Deterministic per-center Linear(hidden_dim, 2*counts[i]) parameters.
    weights, biases = [], []
    for i, c in enumerate(counts):
        kw, kb = k_params[2 * i], k_params[2 * i + 1]
        weights.append(jax.random.normal(kw, (hidden_dim, 2 * c), jnp.float32) * 0.05)
        biases.append(jax.random.normal(kb, (2 * c,), jnp.float32) * 0.05)

    # ---- one-time parameter packing (hoisted out of the forward hot path) ----
    w_pack, b_pack = pack_classifier_params(weights, biases, counts, hidden_dim, n_pad)
    jax.block_until_ready(w_pack)

    out_tensor, au_masks = classifier_forward(
        tensors, masks, w_pack, b_pack, counts=counts, n_pad=n_pad)
    jax.block_until_ready(out_tensor)
    jax.block_until_ready(au_masks)

    ref_out, ref_masks = classifier_reference(tensors, masks, weights, biases, counts)
    assert out_tensor.shape == (batch, n_au, 2)
    assert au_masks.shape == (batch, n_au)
    # bf16 operands on the MXU path -> compare against the f32 reference with a
    # tolerance covering bf16 rounding (observed error is ~1e-3).
    assert jnp.allclose(out_tensor, ref_out, atol=1e-2, rtol=1e-2)
    assert jnp.array_equal(au_masks, ref_masks)

    print("KERNEL_OK")
</pallas_src>

<mosaic_0001>
module attributes {stable_mosaic.version = 11 : i64} {
  func.func @classifier_kernel(%arg0: memref<2x128xf32, #tpu.memory_space<vmem>>, %arg1: memref<128x256xbf16, #tpu.memory_space<vmem>>, %arg2: memref<1x256xf32, #tpu.memory_space<vmem>>, %arg3: memref<2x256xf32, #tpu.memory_space<vmem>>) attributes {dimension_semantics = [], scalar_prefetch = 0 : i64, scratch_operands = 0 : i64, tpu.core_type = #tpu.core_type<tc>} {
    %c0 = arith.constant 0 : index
    %c0_0 = arith.constant 0 : index
    %0 = vector.load %arg0[%c0, %c0_0] : memref<2x128xf32, #tpu.memory_space<vmem>>, vector<2x128xf32>
    %1 = arith.truncf %0 : vector<2x128xf32> to vector<2x128xbf16>
    %c0_1 = arith.constant 0 : index
    %c0_2 = arith.constant 0 : index
    %2 = vector.load %arg1[%c0_1, %c0_2] : memref<128x256xbf16, #tpu.memory_space<vmem>>, vector<128x256xbf16>
    %cst = arith.constant dense<0.000000e+00> : vector<2x256xf32>
    %3 = tpu.matmul %1, %2, %cst {dimension_numbers = #tpu.dot_dimension_numbers<[1], [0], [0], [1], [0, 0, 1, 1], [], []>} : vector<2x128xbf16>, vector<128x256xbf16>, vector<2x256xf32> -> vector<2x256xf32>
    %c0_3 = arith.constant 0 : index
    %c0_4 = arith.constant 0 : index
    %4 = vector.load %arg2[%c0_3, %c0_4] : memref<1x256xf32, #tpu.memory_space<vmem>>, vector<1x256xf32>
    %5 = vector.broadcast %4 : vector<1x256xf32> to vector<2x256xf32>
    %6 = arith.addf %3, %5 : vector<2x256xf32>
    %7 = vector.extract_strided_slice %6 {offsets = [0, 0], sizes = [2, 128], strides = [1, 1]} : vector<2x256xf32> to vector<2x128xf32>
    %8 = vector.extract_strided_slice %6 {offsets = [0, 128], sizes = [2, 128], strides = [1, 1]} : vector<2x256xf32> to vector<2x128xf32>
    %9 = arith.subf %7, %8 : vector<2x128xf32>
    %10 = math.absf %9 : vector<2x128xf32>
    %cst_5 = arith.constant 0.000000e+00 : f32
    %11 = vector.broadcast %cst_5 : f32 to vector<2x128xf32>
    %12 = arith.subf %11, %10 : vector<2x128xf32>
    %13 = math.exp %12 : vector<2x128xf32>
    %cst_6 = arith.constant 1.000000e+00 : f32
    %14 = vector.broadcast %cst_6 : f32 to vector<2x128xf32>
    %15 = arith.addf %14, %13 : vector<2x128xf32>
    %16 = math.log %15 : vector<2x128xf32>
    %cst_7 = arith.constant 0.000000e+00 : f32
    %17 = vector.broadcast %cst_7 : f32 to vector<2x128xf32>
    %18 = arith.minimumf %9, %17 : vector<2x128xf32>
    %19 = arith.subf %18, %16 : vector<2x128xf32>
    %c0_8 = arith.constant 0 : index
    %c0_9 = arith.constant 0 : index
    %20 = vector.load %arg3[%c0_8, %c0_9] : memref<2x256xf32, #tpu.memory_space<vmem>>, vector<2x128xf32>
    tpu.vector_store %arg3[%c0_8, %c0_9], %19 {strides = array<i32>} : memref<2x256xf32, #tpu.memory_space<vmem>>, vector<2x128xf32>,
    %cst_10 = arith.constant 0.000000e+00 : f32
    %21 = vector.broadcast %cst_10 : f32 to vector<2x128xf32>
    %22 = arith.subf %21, %9 : vector<2x128xf32>
    %cst_11 = arith.constant 0.000000e+00 : f32
    %23 = vector.broadcast %cst_11 : f32 to vector<2x128xf32>
    %24 = arith.minimumf %22, %23 : vector<2x128xf32>
    %25 = arith.subf %24, %16 : vector<2x128xf32>
    %c0_12 = arith.constant 0 : index
    %c128 = arith.constant 128 : index
    %26 = vector.load %arg3[%c0_12, %c128] : memref<2x256xf32, #tpu.memory_space<vmem>>, vector<2x128xf32>
    tpu.vector_store %arg3[%c0_12, %c128], %25 {strides = array<i32>} : memref<2x256xf32, #tpu.memory_space<vmem>>, vector<2x128xf32>,
    return
  }
}

</mosaic_0001>

<llo_original>
// kernel: classifier_forward.1
$region0: #{classifier_forward.1}
  #allocation0 [shape = 'u32[]', space=smem, size = 0x4, offset = 0x4, fixed_abs, tag = 'smem constant byte address 0x4 - core index']
  #allocation1 [shape = 'u32[144,128]{1,0:T(1,128)}', space=vmem, size = 0x12000, scoped, tag = 'internal scratch']
  %s0 = inlined_call_operand.vmem [shape: f32[2,128], index: 0, kind: input, shape index: {}]
  %s1 = inlined_call_operand.hbm [shape: bf16[128,256], index: 1, kind: input, shape index: {}]
  %s2 = inlined_call_operand.vmem [shape: f32[1,256], index: 2, kind: input, shape index: {}]
  %s3 = inlined_call_operand.vmem [shape: f32[2,256], index: 3, kind: output, shape index: {}]
  %s4 = sld [smem:[#allocation0]]
  $region26: #{classifier_forward.1} parent=0
    _
  %s6 = ssub.s32 1, %s4
  %s7 = scalar_select 0, %s6, %s4
  $region1: #{classifier_forward.1} parent=0
    #allocation2 [shape = 'u8[65536]{0}', space=vmem, size = 0x10000, scoped, tag = 'input window, operand 1, single buffered']
    #allocation3 [shape = 's32[1]{0}', space=sflag, size = 0x4, scoped, tag = 'scoped memory for classifier_forward.1']
    %8 = vsyncpa [#allocation3], 0
    // Predicated region
    $region2: #{classifier_forward.1} parent=1 // pred_check
      _
    $region3: #{classifier_forward.1} parent=1 // pred_check_branch
      %10 = sbr.rel (0) target = $region5
    $region4: #{classifier_forward.1} parent=1 // pred_region
      _
    $region5: #{classifier_forward.1} parent=1 // pred_fallthru
      _
    // Predicated region
    $region6: #{classifier_forward.1} parent=1 // pred_check
      _
    $region7: #{classifier_forward.1} parent=1 // pred_check_branch
      %12 = sbr.rel (0) target = $region9
    $region8: #{classifier_forward.1} parent=1 // pred_region
      %s14 = ssub.s32 2048, 2048
      %15 = vsyncadd [#allocation3], %s14
      %s16 = sshll.u32 [#allocation2], 4
      %s17 = int_to_ptr.vmem [resolvable:$true] %s16
      %22 = dma.hbm_to_vmem [thread:$0]  %s1, 2048, %s17, [#allocation3], 128, 128, 8
    $region9: #{classifier_forward.1} parent=1 // pred_fallthru
      _
    // Predicated region
    $region10: #{classifier_forward.1} parent=1 // pred_check
      _
    $region11: #{classifier_forward.1} parent=1 // pred_check_branch
      %24 = sbr.rel (0) target = $region13
    $region12: #{classifier_forward.1} parent=1 // pred_region
      _
    $region13: #{classifier_forward.1} parent=1 // pred_fallthru
      _
    // Predicated region
    $region14: #{classifier_forward.1} parent=1 // pred_check
      _
    $region15: #{classifier_forward.1} parent=1 // pred_check_branch
      %26 = sbr.rel (0) target = $region17
    $region16: #{classifier_forward.1} parent=1 // pred_region
      %27 = dma.done [#allocation3], 2048
    $region17: #{classifier_forward.1} parent=1 // pred_fallthru
      _
    %v29 = vld [vmem:[%s0] sm:$0x3]
    %v30 = vpack.c.bf16 %v29, %v29
    %v31 = vld [vmem:[#allocation2] sm:$0xff]
    %v32 = vld [vmem:[#allocation2 + $0x8] sm:$0xff]
    %v33 = vld [vmem:[#allocation2 + $0x10] sm:$0xff]
    %v34 = vld [vmem:[#allocation2 + $0x18] sm:$0xff]
    %v35 = vld [vmem:[#allocation2 + $0x20] sm:$0xff]
    %v36 = vld [vmem:[#allocation2 + $0x28] sm:$0xff]
    %v37 = vld [vmem:[#allocation2 + $0x30] sm:$0xff]
    %v38 = vld [vmem:[#allocation2 + $0x38] sm:$0xff]
    %v39 = vld [vmem:[#allocation2 + $0x40] sm:$0xff]
    %v40 = vld [vmem:[#allocation2 + $0x48] sm:$0xff]
    %v41 = vld [vmem:[#allocation2 + $0x50] sm:$0xff]
    %v42 = vld [vmem:[#allocation2 + $0x58] sm:$0xff]
    %v43 = vld [vmem:[#allocation2 + $0x60] sm:$0xff]
    %v44 = vld [vmem:[#allocation2 + $0x68] sm:$0xff]
    %v45 = vld [vmem:[#allocation2 + $0x70] sm:$0xff]
    %v46 = vld [vmem:[#allocation2 + $0x78] sm:$0xff]
    %v47 = vld [vmem:[%s2] sm:$0x3]
    %v49 = vlaneseq
    %v50 = vshrl.u32 %v49, 7
    %v51 = vsub.s32 0, %v50
    %v52 = vrot.slane %v47, %v51
    %v53 = vlaneseq
    %v54 = vshrl.u32 %v53, 7
    %v55 = vsub.s32 1, %v54
    %v56 = vrot.slane %v47, %v55
    %v75 = vunpack.c.l.b16 %v31
    %v76 = vunpack.c.h.b16 %v31
    %v77 = vunpack.c.l.b16 %v32
    %v78 = vunpack.c.h.b16 %v32
    %v79 = vunpack.c.l.b16 %v33
    %v80 = vunpack.c.h.b16 %v33
    %v81 = vunpack.c.l.b16 %v34
    %v82 = vunpack.c.h.b16 %v34
    %v83 = vunpack.c.l.b16 %v35
    %v84 = vunpack.c.h.b16 %v35
    %v85 = vunpack.c.l.b16 %v36
    %v86 = vunpack.c.h.b16 %v36
    %v87 = vunpack.c.l.b16 %v37
    %v88 = vunpack.c.h.b16 %v37
    %v89 = vunpack.c.l.b16 %v38
    %v90 = vunpack.c.h.b16 %v38
    %v91 = vunpack.c.l.b16 %v39
    %v92 = vunpack.c.h.b16 %v39
    %v93 = vunpack.c.l.b16 %v40
    %v94 = vunpack.c.h.b16 %v40
    %v95 = vunpack.c.l.b16 %v41
    %v96 = vunpack.c.h.b16 %v41
    %v97 = vunpack.c.l.b16 %v42
    %v98 = vunpack.c.h.b16 %v42
    %v99 = vunpack.c.l.b16 %v43
    %v100 = vunpack.c.h.b16 %v43
    %v101 = vunpack.c.l.b16 %v44
    %v102 = vunpack.c.h.b16 %v44
    %v103 = vunpack.c.l.b16 %v45
    %v104 = vunpack.c.h.b16 %v45
    %v105 = vunpack.c.l.b16 %v46
    %v106 = vunpack.c.h.b16 %v46
    %v107 = vpack.c.b16 %v77, %v75
    %v108 = vpack.c.b16 %v78, %v76
    %v109 = vpack.c.b16 %v81, %v79
    %v110 = vpack.c.b16 %v82, %v80
    %v111 = vpack.c.b16 %v85, %v83
    %v112 = vpack.c.b16 %v86, %v84
    %v113 = vpack.c.b16 %v89, %v87
    %v114 = vpack.c.b16 %v90, %v88
    %v115 = vpack.c.b16 %v93, %v91
    %v116 = vpack.c.b16 %v94, %v92
    %v117 = vpack.c.b16 %v97, %v95
    %v118 = vpack.c.b16 %v98, %v96
    %v119 = vpack.c.b16 %v101, %v99
    %v120 = vpack.c.b16 %v102, %v100
    %v121 = vpack.c.b16 %v105, %v103
    %v122 = vpack.c.b16 %v106, %v104
    %139 = vmatprep.subr.bf16.mxu0 %v108
    %140 = vmatpush1.bf16.msra.mxu0 %v107
    %141 = vmatprep.subr.bf16.mxu0 %v110
    %142 = vmatpush1.bf16.msra.mxu0 %v109
    %143 = vmatprep.subr.bf16.mxu0 %v112
    %144 = vmatpush1.bf16.msra.mxu0 %v111
    %145 = vmatprep.subr.bf16.mxu0 %v114
    %146 = vmatpush1.bf16.msra.mxu0 %v113
    %147 = vmatprep.subr.bf16.mxu0 %v116
    %148 = vmatpush1.bf16.msra.mxu0 %v115
    %149 = vmatprep.subr.bf16.mxu0 %v118
    %150 = vmatpush1.bf16.msra.mxu0 %v117
    %151 = vmatprep.subr.bf16.mxu0 %v120
    %152 = vmatpush1.bf16.msra.mxu0 %v119
    %153 = vmatprep.subr.bf16.mxu0 %v122
    %154 = vmatpush1.bf16.msra.mxu0 %v121
    %155 = vmatprep.subr.bf16.mxu0 0
    %156 = vmatpush1.bf16.msra.mxu0 0
    %157 = vmatprep.subr.bf16.mxu0 0
    %158 = vmatpush1.bf16.msra.mxu0 0
    %159 = vmatprep.subr.bf16.mxu0 0
    %160 = vmatpush1.bf16.msra.mxu0 0
    %161 = vmatprep.subr.bf16.mxu0 0
    %162 = vmatpush1.bf16.msra.mxu0 0
    %163 = vmatprep.subr.bf16.mxu0 0
    %164 = vmatpush1.bf16.msra.mxu0 0
    %165 = vmatprep.subr.bf16.mxu0 0
    %166 = vmatpush1.bf16.msra.mxu0 0
    %167 = vmatprep.subr.bf16.mxu0 0
    %168 = vmatpush1.bf16.msra.mxu0 0
    %169 = vmatprep.subr.bf16.mxu0 0
    %170 = vmatpush1.bf16.msra.mxu0 0
    %171 = vmatprep.mubr.bf16.mxu0 0
    %172 = vmatmul.mubr.bf16.gmra.mrb[0].mxu0 %v30
    %v173 = vpop.f32.mrb[0].mxu0
    %v174 = vadd.f32 %v52, %v173
    %v175 = vpop.f32.mrb[0].mxu0
    %v176 = vadd.f32 %v56, %v175
    %v177 = vpop.f32.mrb[0].mxu0
    %v178 = vpop.f32.mrb[0].mxu0
    %179 = vdwg.mxu0
    %v180 = vsub.f32 %v174, %v176
    %v181 = vand.u32 2147483647, %v180
    %v182 = vsub.f32 0.0, %v181
    %v183 = vmul.f32 %v182, 1.442695
    %v184 = vpow.pop %v183
    %v185 = vadd.f32 %v184, 1.0
    %v186 = vlog2.pop %v185
    %v187 = vmul.f32 %v186, 0.6931472
    %v188 = vmin.f32 %v180, 0.0
    %v189 = vsub.f32 %v188, %v187
    %190 = vst [vmem:[%s3] sm:$0x3] %v189
    %v191 = vsub.f32 0.0, %v180
    %v192 = vmin.f32 %v191, 0.0
    %v193 = vsub.f32 %v192, %v187
    %194 = vst [vmem:[%s3 + $0x2] sm:$0x3] %v193
    // Predicated region
    $region18: #{classifier_forward.1} parent=1 // pred_check
      _
    $region19: #{classifier_forward.1} parent=1 // pred_check_branch
      %196 = sbr.rel (0) target = $region21
    $region20: #{classifier_forward.1} parent=1 // pred_region
      _
    $region21: #{classifier_forward.1} parent=1 // pred_fallthru
      _
    // Predicated region
    $region22: #{classifier_forward.1} parent=1 // pred_check
      _
    $region23: #{classifier_forward.1} parent=1 // pred_check_branch
      %198 = sbr.rel (0) target = $region25
    $region24: #{classifier_forward.1} parent=1 // pred_region
      _
    $region25: #{classifier_forward.1} parent=1 // pred_fallthru
      _
    %199 = vsyncpa [#allocation3], 1

</llo_original>
